<compile_context>
chip_gen: v6e
topology: v6e:2x2x1
jax: 0.10.0
libtpu: 0.0.40
codegen_flags: <defaults>
</compile_context>

<pallas_src>
import jax
import jax.numpy as jnp
from jax.experimental import pallas as pl
from jax.experimental.pallas import tpu as pltpu

LOG_SIG_MAX = 2.0
LOG_SIG_MIN = -20.0


def _round_up(x, m):
    return ((x + m - 1) // m) * m


# ---------------------------------------------------------------------------
# Kernel
# ---------------------------------------------------------------------------
def _policy_body(state_ref, alpha_ref, w1s_ref, w1a_ref, w2_ref, wh_ref,
                 b1_ref, b2_ref, hb_ref, hmin_ref, hmax_ref, out_ref):
    # linear1: state rows on the MXU; alpha row(s) as a rank-1 VPU broadcast
    # (alpha_dim == 1) hidden under the MXU work -> no concat, no extra MXU push.
    h1 = jnp.dot(state_ref[...], w1s_ref[...], preferred_element_type=jnp.float32)
    if alpha_ref is not None:
        if alpha_ref.shape[1] == 1:
            h1 = h1 + (alpha_ref[...].astype(jnp.float32)
                       * w1a_ref[...].astype(jnp.float32))
        else:
            h1 = h1 + jnp.dot(alpha_ref[...], w1a_ref[...],
                              preferred_element_type=jnp.float32)
    h1 = jnp.maximum(h1 + b1_ref[...], 0.0)

    # linear2 + ReLU
    h2 = jnp.dot(h1.astype(w2_ref.dtype), w2_ref[...],
                 preferred_element_type=jnp.float32)
    h2 = jnp.maximum(h2 + b2_ref[...], 0.0)

    # fused, lane-padded heads: columns [0, A_pad) = mean, [A_pad, 2*A_pad) = log_std.
    # Per-column min/max rows implement the log_std clamp (mean bounds are +/-inf),
    # avoiding an iota + select.
    heads = jnp.dot(h2.astype(wh_ref.dtype), wh_ref[...],
                    preferred_element_type=jnp.float32) + hb_ref[...]
    heads = jnp.minimum(jnp.maximum(heads, hmin_ref[...]), hmax_ref[...])
    out_ref[...] = heads.astype(out_ref.dtype)


def _make_kernel(has_alpha):
    if has_alpha:
        def kernel(state_ref, alpha_ref, w1s_ref, w1a_ref, w2_ref, wh_ref,
                   b1_ref, b2_ref, hb_ref, hmin_ref, hmax_ref, out_ref):
            _policy_body(state_ref, alpha_ref, w1s_ref, w1a_ref, w2_ref, wh_ref,
                         b1_ref, b2_ref, hb_ref, hmin_ref, hmax_ref, out_ref)
    else:
        def kernel(state_ref, w1s_ref, w2_ref, wh_ref,
                   b1_ref, b2_ref, hb_ref, hmin_ref, hmax_ref, out_ref):
            _policy_body(state_ref, None, w1s_ref, None, w2_ref, wh_ref,
                         b1_ref, b2_ref, hb_ref, hmin_ref, hmax_ref, out_ref)
    return kernel


# ---------------------------------------------------------------------------
# One-time parameter preparation
# ---------------------------------------------------------------------------
def prepare_policy_params(policy_params, state_dim, alpha_dim=1,
                          alpha_embedding=True, use_bf16=True):
    """One-time prep: transpose, fuse + lane-pad heads, build bias/clamp rows.

    policy_params (PyTorch convention):
      (w1 (H, in), b1 (H,), w2 (H, H), b2 (H,),
       wm (A, H), bm (A,), ws (A, H), bs (A,))
    """
    (w1, b1, w2, b2, wm, bm, ws, bs) = [jnp.asarray(p, jnp.float32)
                                        for p in policy_params]
    hidden = w1.shape[0]
    num_actions = wm.shape[0]
    wdt = jnp.bfloat16 if use_bf16 else jnp.float32

    if alpha_embedding:
        assert w1.shape[1] == state_dim + alpha_dim
        w1s = w1[:, :state_dim].T.astype(wdt)     # (state_dim, H)
        w1a = w1[:, state_dim:].T.astype(wdt)     # (alpha_dim, H)
    else:
        assert w1.shape[1] == state_dim
        w1s = w1.T.astype(wdt)
        w1a = None

    w2t = w2.T.astype(wdt)                        # (H, H)

    # Fused, lane-dense heads: mean in columns [0, A_pad), log_std in
    # [A_pad, 2*A_pad), with A_pad a multiple of 64 so the packed output width
    # is a multiple of 128 lanes (unmasked stores).
    A_pad = _round_up(max(num_actions, 64), 64)
    out_width = 2 * A_pad
    wheads = jnp.zeros((hidden, out_width), jnp.float32)
    wheads = wheads.at[:, :num_actions].set(wm.T)
    wheads = wheads.at[:, A_pad:A_pad + num_actions].set(ws.T)
    wheads = wheads.astype(wdt)

    hbias = jnp.zeros((1, out_width), jnp.float32)
    hbias = hbias.at[0, :num_actions].set(bm)
    hbias = hbias.at[0, A_pad:A_pad + num_actions].set(bs)

    hmin = jnp.concatenate([jnp.full((1, A_pad), -jnp.inf, jnp.float32),
                            jnp.full((1, A_pad), LOG_SIG_MIN, jnp.float32)], axis=1)
    hmax = jnp.concatenate([jnp.full((1, A_pad), jnp.inf, jnp.float32),
                            jnp.full((1, A_pad), LOG_SIG_MAX, jnp.float32)], axis=1)

    return dict(w1s=w1s, w1a=w1a, w2=w2t, wheads=wheads,
                b1=b1.reshape(1, -1), b2=b2.reshape(1, -1),
                hbias=hbias, hmin=hmin, hmax=hmax,
                hidden=hidden, num_actions=num_actions, a_pad=A_pad,
                out_width=out_width, alpha_dim=alpha_dim,
                alpha_embedding=alpha_embedding, use_bf16=use_bf16)


# ---------------------------------------------------------------------------
# Forward wrapper
# ---------------------------------------------------------------------------
_SINGLE_BUFFER_CONSTS = [True]   # flipped once (and cached) if Buffered(1) unsupported


def _const_spec(arr, single_buffer):
    shape = arr.shape
    idx = lambda i: (0,) * len(shape)
    if single_buffer:
        try:
            return pl.BlockSpec(shape, idx, pipeline_mode=pl.Buffered(1))
        except Exception:
            _SINGLE_BUFFER_CONSTS[0] = False
    return pl.BlockSpec(shape, idx)


def new_gaussian_policy_forward(state, alpha, prepared):
    """Returns (mean, log_std), each (B, num_actions), matching PyTorch forward()."""
    B = state.shape[0]
    A = prepared["num_actions"]
    A_pad = prepared["a_pad"]
    out_width = prepared["out_width"]
    H = prepared["hidden"]
    has_alpha = prepared["alpha_embedding"]
    use_bf16 = prepared["use_bf16"]
    adt = jnp.bfloat16 if use_bf16 else jnp.float32

    # Batch tiling:
    #   * sublane pack: 16 rows/vreg (bf16) or 8 (f32)
    #   * >= 2 grid steps for non-trivial batches so ("parallel",) shards across
    #     both v7x TensorCores; tiles up to 1024 rows amortize the ~0.35us/step
    #     overhead on v5e/v6e.  Weights stay VMEM-resident (constant index_map).
    pack = 16 if use_bf16 else 8
    MAX_TB = 1024
    if B <= 256:
        TB = _round_up(B, pack)
    else:
        TB = min(MAX_TB, _round_up(-(-B // 2), pack))
    B_pad = _round_up(B, TB)
    grid = (B_pad // TB,)

    state_in = state.astype(adt)
    if B_pad != B:
        state_in = jnp.pad(state_in, ((0, B_pad - B), (0, 0)))
    state_dim = state_in.shape[1]

    inputs = [state_in]
    data_specs = [pl.BlockSpec((TB, state_dim), lambda i: (i, 0))]
    alpha_dim = 0
    if has_alpha:
        alpha_in = alpha.astype(adt)
        if B_pad != B:
            alpha_in = jnp.pad(alpha_in, ((0, B_pad - B), (0, 0)))
        alpha_dim = alpha_in.shape[1]
        inputs.append(alpha_in)
        data_specs.append(pl.BlockSpec((TB, alpha_dim), lambda i: (i, 0)))

    const_names = (["w1s", "w1a"] if has_alpha else ["w1s"]) + \
                  ["w2", "wheads", "b1", "b2", "hbias", "hmin", "hmax"]
    consts = [prepared[n] for n in const_names]

    wdt_bytes = 2 if use_bf16 else 4
    weight_elems = H * (state_dim + alpha_dim + H + out_width)
    bias_elems = 2 * H + 3 * out_width
    flops = 2 * B_pad * H * (state_dim + alpha_dim + H + out_width)
    bytes_accessed = (B_pad * (state_dim + alpha_dim) * wdt_bytes
                      + B_pad * out_width * 4
                      + weight_elems * wdt_bytes + bias_elems * 4)
    cost = pl.CostEstimate(flops=int(flops), transcendentals=0,
                           bytes_accessed=int(bytes_accessed))

    kernel = _make_kernel(has_alpha)
    out_shape = jax.ShapeDtypeStruct((B_pad, out_width), jnp.float32)

    def run(single_buffer):
        const_bufs = 1 if single_buffer else 2
        vmem_needed = (const_bufs * (weight_elems * wdt_bytes + bias_elems * 4)
                       + 2 * TB * (state_dim + alpha_dim) * wdt_bytes   # x tiles (dbl-buf)
                       + 2 * TB * out_width * 4                         # out tiles
                       + TB * (2 * H + out_width) * 4)                  # h1/h2/heads live
        vmem_limit = int(min(max(2 * vmem_needed + (4 << 20), 32 << 20), 64 << 20))
        in_specs = data_specs + [_const_spec(c, single_buffer) for c in consts]
        return pl.pallas_call(
            kernel,
            out_shape=out_shape,
            grid=grid,
            in_specs=in_specs,
            out_specs=pl.BlockSpec((TB, out_width), lambda i: (i, 0)),
            compiler_params=pltpu.CompilerParams(
                dimension_semantics=("parallel",),
                vmem_limit_bytes=vmem_limit),
            cost_estimate=cost,
        )(*inputs, *consts)

    if _SINGLE_BUFFER_CONSTS[0]:
        try:
            packed = run(single_buffer=True)
        except Exception:
            _SINGLE_BUFFER_CONSTS[0] = False   # cache fallback; retry double-buffered
            packed = run(single_buffer=False)
    else:
        packed = run(single_buffer=False)

    mean = packed[:B, :A]
    log_std = packed[:B, A_pad:A_pad + A]
    return mean, log_std


# ---------------------------------------------------------------------------
# Pure-JAX reference + tests
# ---------------------------------------------------------------------------
def _reference_forward(state, alpha, policy_params, alpha_embedding=True):
    (w1, b1, w2, b2, wm, bm, ws, bs) = policy_params
    x = jnp.concatenate([state, alpha], axis=1) if alpha_embedding else state
    x = jnp.maximum(x @ w1.T + b1, 0.0)
    x = jnp.maximum(x @ w2.T + b2, 0.0)
    mean = x @ wm.T + bm
    log_std = jnp.clip(x @ ws.T + bs, LOG_SIG_MIN, LOG_SIG_MAX)
    return mean, log_std


if __name__ == "__main__":
    # Small shapes: batch=2, state_dim=16, alpha_dim=1, hidden=32, actions=4.
    B, STATE_DIM, ALPHA_DIM, HIDDEN, NUM_ACTIONS = 2, 16, 1, 32, 4
    IN_DIM = STATE_DIM + ALPHA_DIM

    key = jax.random.PRNGKey(0)
    ks = jax.random.split(key, 10)
    scale = 0.1
    policy_params = (
        scale * jax.random.normal(ks[0], (HIDDEN, IN_DIM), jnp.float32),       # linear1_weight
        scale * jax.random.normal(ks[1], (HIDDEN,), jnp.float32),              # linear1_bias
        scale * jax.random.normal(ks[2], (HIDDEN, HIDDEN), jnp.float32),       # linear2_weight
        scale * jax.random.normal(ks[3], (HIDDEN,), jnp.float32),              # linear2_bias
        scale * jax.random.normal(ks[4], (NUM_ACTIONS, HIDDEN), jnp.float32),  # mean_linear_weight
        scale * jax.random.normal(ks[5], (NUM_ACTIONS,), jnp.float32),         # mean_linear_bias
        scale * jax.random.normal(ks[6], (NUM_ACTIONS, HIDDEN), jnp.float32),  # log_std_linear_weight
        scale * jax.random.normal(ks[7], (NUM_ACTIONS,), jnp.float32),         # log_std_linear_bias
    )

    state = jax.random.normal(ks[8], (B, STATE_DIM), jnp.float32)
    alpha = jax.random.normal(ks[9], (B, ALPHA_DIM), jnp.float32)
    mean_ref, log_std_ref = _reference_forward(state, alpha, policy_params, True)

    # 1) Default bf16 MXU-operand mode (f32 accumulation) -- relaxed tolerance.
    prep_bf16 = prepare_policy_params(policy_params, state_dim=STATE_DIM,
                                      alpha_dim=ALPHA_DIM, alpha_embedding=True)
    mean, log_std = new_gaussian_policy_forward(state, alpha, prep_bf16)
    jax.block_until_ready((mean, log_std))
    assert mean.shape == (B, NUM_ACTIONS) and log_std.shape == (B, NUM_ACTIONS)
    assert jnp.allclose(mean, mean_ref, atol=3e-2, rtol=3e-2)
    assert jnp.allclose(log_std, log_std_ref, atol=3e-2, rtol=3e-2)

    # 2) f32 mode -- tight correctness check.
    prep_f32 = prepare_policy_params(policy_params, state_dim=STATE_DIM,
                                     alpha_dim=ALPHA_DIM, alpha_embedding=True,
                                     use_bf16=False)
    mean32, log_std32 = new_gaussian_policy_forward(state, alpha, prep_f32)
    jax.block_until_ready((mean32, log_std32))
    assert jnp.allclose(mean32, mean_ref, atol=1e-5, rtol=1e-5)
    assert jnp.allclose(log_std32, log_std_ref, atol=1e-5, rtol=1e-5)

    # 3) Batch-tiled / padded path: >= 2 grid steps (both v7x cores), bf16 default.
    B2 = 600
    kb = jax.random.split(jax.random.PRNGKey(1), 2)
    state2 = jax.random.normal(kb[0], (B2, STATE_DIM), jnp.float32)
    alpha2 = jax.random.normal(kb[1], (B2, ALPHA_DIM), jnp.float32)
    mean2, log_std2 = new_gaussian_policy_forward(state2, alpha2, prep_bf16)
    jax.block_until_ready((mean2, log_std2))
    mean2_ref, log_std2_ref = _reference_forward(state2, alpha2, policy_params, True)
    assert jnp.allclose(mean2, mean2_ref, atol=3e-2, rtol=3e-2)
    assert jnp.allclose(log_std2, log_std2_ref, atol=3e-2, rtol=3e-2)

    # 4) alpha_embedding=False variant: kernel compiled without the alpha input.
    params_noalpha = (policy_params[0][:, :STATE_DIM],) + policy_params[1:]
    prep_na = prepare_policy_params(params_noalpha, state_dim=STATE_DIM,
                                    alpha_dim=ALPHA_DIM, alpha_embedding=False,
                                    use_bf16=False)
    mean_na, log_std_na = new_gaussian_policy_forward(state, alpha, prep_na)
    jax.block_until_ready((mean_na, log_std_na))
    mean_na_ref, log_std_na_ref = _reference_forward(state, alpha, params_noalpha, False)
    assert jnp.allclose(mean_na, mean_na_ref, atol=1e-5, rtol=1e-5)
    assert jnp.allclose(log_std_na, log_std_na_ref, atol=1e-5, rtol=1e-5)

    # TODO(synk): sample()/get_log_prob() need RNG sampling / tanh-squash log-prob;
    # only forward() is implemented as the kernel per the hot-path requirement.

    print("KERNEL_OK")
</pallas_src>

<mosaic_0001>
module attributes {stable_mosaic.version = 11 : i64} {
  func.func @kernel(%arg0: i32, %arg1: memref<16x16xbf16, #tpu.memory_space<vmem>>, %arg2: memref<16x1xbf16, #tpu.memory_space<vmem>>, %arg3: memref<16x32xbf16, #tpu.memory_space<vmem>>, %arg4: memref<1x32xbf16, #tpu.memory_space<vmem>>, %arg5: memref<32x32xbf16, #tpu.memory_space<vmem>>, %arg6: memref<32x128xbf16, #tpu.memory_space<vmem>>, %arg7: memref<1x32xf32, #tpu.memory_space<vmem>>, %arg8: memref<1x32xf32, #tpu.memory_space<vmem>>, %arg9: memref<1x128xf32, #tpu.memory_space<vmem>>, %arg10: memref<1x128xf32, #tpu.memory_space<vmem>>, %arg11: memref<1x128xf32, #tpu.memory_space<vmem>>, %arg12: memref<16x128xf32, #tpu.memory_space<vmem>>) attributes {dimension_semantics = [#tpu.dimension_semantics<parallel>], iteration_bounds = array<i64: 1>, scalar_prefetch = 0 : i64, scratch_operands = 0 : i64, tpu.core_type = #tpu.core_type<tc>, window_params = [{transform_indices = @transform_0, window_bounds = array<i64: 16, 16>}, {transform_indices = @transform_1, window_bounds = array<i64: 16, 1>}, {pipeline_mode = #tpu.pipeline_mode<synchronous>, transform_indices = @transform_2, window_bounds = array<i64: 16, 32>}, {pipeline_mode = #tpu.pipeline_mode<synchronous>, transform_indices = @transform_3, window_bounds = array<i64: 1, 32>}, {pipeline_mode = #tpu.pipeline_mode<synchronous>, transform_indices = @transform_4, window_bounds = array<i64: 32, 32>}, {pipeline_mode = #tpu.pipeline_mode<synchronous>, transform_indices = @transform_5, window_bounds = array<i64: 32, 128>}, {pipeline_mode = #tpu.pipeline_mode<synchronous>, transform_indices = @transform_6, window_bounds = array<i64: 1, 32>}, {pipeline_mode = #tpu.pipeline_mode<synchronous>, transform_indices = @transform_7, window_bounds = array<i64: 1, 32>}, {pipeline_mode = #tpu.pipeline_mode<synchronous>, transform_indices = @transform_8, window_bounds = array<i64: 1, 128>}, {pipeline_mode = #tpu.pipeline_mode<synchronous>, transform_indices = @transform_9, window_bounds = array<i64: 1, 128>}, {pipeline_mode = #tpu.pipeline_mode<synchronous>, transform_indices = @transform_10, window_bounds = array<i64: 1, 128>}, {transform_indices = @transform_11, window_bounds = array<i64: 16, 128>}]} {
    %c0 = arith.constant 0 : index
    %c0_0 = arith.constant 0 : index
    %0 = vector.load %arg1[%c0, %c0_0] : memref<16x16xbf16, #tpu.memory_space<vmem>>, vector<16x16xbf16>
    %c0_1 = arith.constant 0 : index
    %c0_2 = arith.constant 0 : index
    %1 = vector.load %arg3[%c0_1, %c0_2] : memref<16x32xbf16, #tpu.memory_space<vmem>>, vector<16x32xbf16>
    %cst = arith.constant dense<0.000000e+00> : vector<16x32xf32>
    %2 = tpu.matmul %0, %1, %cst {dimension_numbers = #tpu.dot_dimension_numbers<[1], [0], [0], [1], [0, 0, 1, 1], [], []>} : vector<16x16xbf16>, vector<16x32xbf16>, vector<16x32xf32> -> vector<16x32xf32>
    %c0_3 = arith.constant 0 : index
    %c0_4 = arith.constant 0 : index
    %3 = vector.load %arg2[%c0_3, %c0_4] : memref<16x1xbf16, #tpu.memory_space<vmem>>, vector<16x1xbf16>
    %4 = arith.extf %3 : vector<16x1xbf16> to vector<16x1xf32>
    %c0_5 = arith.constant 0 : index
    %c0_6 = arith.constant 0 : index
    %5 = vector.load %arg4[%c0_5, %c0_6] : memref<1x32xbf16, #tpu.memory_space<vmem>>, vector<1x32xbf16>
    %6 = arith.extf %5 : vector<1x32xbf16> to vector<1x32xf32>
    %7 = vector.broadcast %4 : vector<16x1xf32> to vector<16x32xf32>
    %8 = vector.broadcast %6 : vector<1x32xf32> to vector<16x32xf32>
    %9 = arith.mulf %7, %8 : vector<16x32xf32>
    %10 = arith.addf %2, %9 : vector<16x32xf32>
    %c0_7 = arith.constant 0 : index
    %c0_8 = arith.constant 0 : index
    %11 = vector.load %arg7[%c0_7, %c0_8] : memref<1x32xf32, #tpu.memory_space<vmem>>, vector<1x32xf32>
    %12 = vector.broadcast %11 : vector<1x32xf32> to vector<16x32xf32>
    %13 = arith.addf %10, %12 : vector<16x32xf32>
    %cst_9 = arith.constant 0.000000e+00 : f32
    %14 = vector.broadcast %cst_9 : f32 to vector<16x32xf32>
    %15 = arith.maximumf %13, %14 : vector<16x32xf32>
    %16 = arith.truncf %15 : vector<16x32xf32> to vector<16x32xbf16>
    %c0_10 = arith.constant 0 : index
    %c0_11 = arith.constant 0 : index
    %17 = vector.load %arg5[%c0_10, %c0_11] : memref<32x32xbf16, #tpu.memory_space<vmem>>, vector<32x32xbf16>
    %cst_12 = arith.constant dense<0.000000e+00> : vector<16x32xf32>
    %18 = tpu.matmul %16, %17, %cst_12 {dimension_numbers = #tpu.dot_dimension_numbers<[1], [0], [0], [1], [0, 0, 1, 1], [], []>} : vector<16x32xbf16>, vector<32x32xbf16>, vector<16x32xf32> -> vector<16x32xf32>
    %c0_13 = arith.constant 0 : index
    %c0_14 = arith.constant 0 : index
    %19 = vector.load %arg8[%c0_13, %c0_14] : memref<1x32xf32, #tpu.memory_space<vmem>>, vector<1x32xf32>
    %20 = vector.broadcast %19 : vector<1x32xf32> to vector<16x32xf32>
    %21 = arith.addf %18, %20 : vector<16x32xf32>
    %cst_15 = arith.constant 0.000000e+00 : f32
    %22 = vector.broadcast %cst_15 : f32 to vector<16x32xf32>
    %23 = arith.maximumf %21, %22 : vector<16x32xf32>
    %24 = arith.truncf %23 : vector<16x32xf32> to vector<16x32xbf16>
    %c0_16 = arith.constant 0 : index
    %c0_17 = arith.constant 0 : index
    %25 = vector.load %arg6[%c0_16, %c0_17] : memref<32x128xbf16, #tpu.memory_space<vmem>>, vector<32x128xbf16>
    %cst_18 = arith.constant dense<0.000000e+00> : vector<16x128xf32>
    %26 = tpu.matmul %24, %25, %cst_18 {dimension_numbers = #tpu.dot_dimension_numbers<[1], [0], [0], [1], [0, 0, 1, 1], [], []>} : vector<16x32xbf16>, vector<32x128xbf16>, vector<16x128xf32> -> vector<16x128xf32>
    %c0_19 = arith.constant 0 : index
    %c0_20 = arith.constant 0 : index
    %27 = vector.load %arg9[%c0_19, %c0_20] : memref<1x128xf32, #tpu.memory_space<vmem>>, vector<1x128xf32>
    %28 = vector.broadcast %27 : vector<1x128xf32> to vector<16x128xf32>
    %29 = arith.addf %26, %28 : vector<16x128xf32>
    %c0_21 = arith.constant 0 : index
    %c0_22 = arith.constant 0 : index
    %30 = vector.load %arg10[%c0_21, %c0_22] : memref<1x128xf32, #tpu.memory_space<vmem>>, vector<1x128xf32>
    %31 = vector.broadcast %30 : vector<1x128xf32> to vector<16x128xf32>
    %32 = arith.maximumf %29, %31 : vector<16x128xf32>
    %c0_23 = arith.constant 0 : index
    %c0_24 = arith.constant 0 : index
    %33 = vector.load %arg11[%c0_23, %c0_24] : memref<1x128xf32, #tpu.memory_space<vmem>>, vector<1x128xf32>
    %34 = vector.broadcast %33 : vector<1x128xf32> to vector<16x128xf32>
    %35 = arith.minimumf %32, %34 : vector<16x128xf32>
    %c0_25 = arith.constant 0 : index
    %c0_26 = arith.constant 0 : index
    %36 = vector.load %arg12[%c0_25, %c0_26] : memref<16x128xf32, #tpu.memory_space<vmem>>, vector<16x128xf32>
    tpu.vector_store %arg12[%c0_25, %c0_26], %35 {strides = array<i32>} : memref<16x128xf32, #tpu.memory_space<vmem>>, vector<16x128xf32>,
    return
  }
  func.func @transform_0(%arg0: i32) -> (i32, i32) {
    %c0_i32 = arith.constant 0 : i32
    %c0_i32_0 = arith.constant 0 : i32
    return %arg0, %c0_i32 : i32, i32
  }
  func.func @transform_1(%arg0: i32) -> (i32, i32) {
    %c0_i32 = arith.constant 0 : i32
    %c0_i32_0 = arith.constant 0 : i32
    return %arg0, %c0_i32 : i32, i32
  }
  func.func @transform_2(%arg0: i32) -> (i32, i32) {
    %c0_i32 = arith.constant 0 : i32
    %c0_i32_0 = arith.constant 0 : i32
    %c0_i32_1 = arith.constant 0 : i32
    return %c0_i32, %c0_i32_0 : i32, i32
  }
  func.func @transform_3(%arg0: i32) -> (i32, i32) {
    %c0_i32 = arith.constant 0 : i32
    %c0_i32_0 = arith.constant 0 : i32
    %c0_i32_1 = arith.constant 0 : i32
    return %c0_i32, %c0_i32_0 : i32, i32
  }
  func.func @transform_4(%arg0: i32) -> (i32, i32) {
    %c0_i32 = arith.constant 0 : i32
    %c0_i32_0 = arith.constant 0 : i32
    %c0_i32_1 = arith.constant 0 : i32
    return %c0_i32, %c0_i32_0 : i32, i32
  }
  func.func @transform_5(%arg0: i32) -> (i32, i32) {
    %c0_i32 = arith.constant 0 : i32
    %c0_i32_0 = arith.constant 0 : i32
    %c0_i32_1 = arith.constant 0 : i32
    return %c0_i32, %c0_i32_0 : i32, i32
  }
  func.func @transform_6(%arg0: i32) -> (i32, i32) {
    %c0_i32 = arith.constant 0 : i32
    %c0_i32_0 = arith.constant 0 : i32
    %c0_i32_1 = arith.constant 0 : i32
    return %c0_i32, %c0_i32_0 : i32, i32
  }
  func.func @transform_7(%arg0: i32) -> (i32, i32) {
    %c0_i32 = arith.constant 0 : i32
    %c0_i32_0 = arith.constant 0 : i32
    %c0_i32_1 = arith.constant 0 : i32
    return %c0_i32, %c0_i32_0 : i32, i32
  }
  func.func @transform_8(%arg0: i32) -> (i32, i32) {
    %c0_i32 = arith.constant 0 : i32
    %c0_i32_0 = arith.constant 0 : i32
    %c0_i32_1 = arith.constant 0 : i32
    return %c0_i32, %c0_i32_0 : i32, i32
  }
  func.func @transform_9(%arg0: i32) -> (i32, i32) {
    %c0_i32 = arith.constant 0 : i32
    %c0_i32_0 = arith.constant 0 : i32
    %c0_i32_1 = arith.constant 0 : i32
    return %c0_i32, %c0_i32_0 : i32, i32
  }
  func.func @transform_10(%arg0: i32) -> (i32, i32) {
    %c0_i32 = arith.constant 0 : i32
    %c0_i32_0 = arith.constant 0 : i32
    %c0_i32_1 = arith.constant 0 : i32
    return %c0_i32, %c0_i32_0 : i32, i32
  }
  func.func @transform_11(%arg0: i32) -> (i32, i32) {
    %c0_i32 = arith.constant 0 : i32
    %c0_i32_0 = arith.constant 0 : i32
    return %arg0, %c0_i32 : i32, i32
  }
}

module attributes {stable_mosaic.version = 11 : i64} {
  func.func @kernel(%arg0: i32, %arg1: memref<16x16xbf16, #tpu.memory_space<vmem>>, %arg2: memref<16x1xbf16, #tpu.memory_space<vmem>>, %arg3: memref<16x32xbf16, #tpu.memory_space<vmem>>, %arg4: memref<1x32xbf16, #tpu.memory_space<vmem>>, %arg5: memref<32x32xbf16, #tpu.memory_space<vmem>>, %arg6: memref<32x128xbf16, #tpu.memory_space<vmem>>, %arg7: memref<1x32xf32, #tpu.memory_space<vmem>>, %arg8: memref<1x32xf32, #tpu.memory_space<vmem>>, %arg9: memref<1x128xf32, #tpu.memory_space<vmem>>, %arg10: memref<1x128xf32, #tpu.memory_space<vmem>>, %arg11: memref<1x128xf32, #tpu.memory_space<vmem>>, %arg12: memref<16x128xf32, #tpu.memory_space<vmem>>) attributes {dimension_semantics = [#tpu.dimension_semantics<parallel>], iteration_bounds = array<i64: 1>, scalar_prefetch = 0 : i64, scratch_operands = 0 : i64, tpu.core_type = #tpu.core_type<tc>, window_params = [{transform_indices = @transform_0, window_bounds = array<i64: 16, 16>}, {transform_indices = @transform_1, window_bounds = array<i64: 16, 1>}, {pipeline_mode = #tpu.pipeline_mode<synchronous>, transform_indices = @transform_2, window_bounds = array<i64: 16, 32>}, {pipeline_mode = #tpu.pipeline_mode<synchronous>, transform_indices = @transform_3, window_bounds = array<i64: 1, 32>}, {pipeline_mode = #tpu.pipeline_mode<synchronous>, transform_indices = @transform_4, window_bounds = array<i64: 32, 32>}, {pipeline_mode = #tpu.pipeline_mode<synchronous>, transform_indices = @transform_5, window_bounds = array<i64: 32, 128>}, {pipeline_mode = #tpu.pipeline_mode<synchronous>, transform_indices = @transform_6, window_bounds = array<i64: 1, 32>}, {pipeline_mode = #tpu.pipeline_mode<synchronous>, transform_indices = @transform_7, window_bounds = array<i64: 1, 32>}, {pipeline_mode = #tpu.pipeline_mode<synchronous>, transform_indices = @transform_8, window_bounds = array<i64: 1, 128>}, {pipeline_mode = #tpu.pipeline_mode<synchronous>, transform_indices = @transform_9, window_bounds = array<i64: 1, 128>}, {pipeline_mode = #tpu.pipeline_mode<synchronous>, transform_indices = @transform_10, window_bounds = array<i64: 1, 128>}, {transform_indices = @transform_11, window_bounds = array<i64: 16, 128>}]} {
    %c0 = arith.constant 0 : index
    %c0_0 = arith.constant 0 : index
    %0 = vector.load %arg1[%c0, %c0_0] : memref<16x16xbf16, #tpu.memory_space<vmem>>, vector<16x16xbf16>
    %c0_1 = arith.constant 0 : index
    %c0_2 = arith.constant 0 : index
    %1 = vector.load %arg3[%c0_1, %c0_2] : memref<16x32xbf16, #tpu.memory_space<vmem>>, vector<16x32xbf16>
    %cst = arith.constant dense<0.000000e+00> : vector<16x32xf32>
    %2 = tpu.matmul %0, %1, %cst {dimension_numbers = #tpu.dot_dimension_numbers<[1], [0], [0], [1], [0, 0, 1, 1], [], []>} : vector<16x16xbf16>, vector<16x32xbf16>, vector<16x32xf32> -> vector<16x32xf32>
    %c0_3 = arith.constant 0 : index
    %c0_4 = arith.constant 0 : index
    %3 = vector.load %arg2[%c0_3, %c0_4] : memref<16x1xbf16, #tpu.memory_space<vmem>>, vector<16x1xbf16>
    %4 = arith.extf %3 : vector<16x1xbf16> to vector<16x1xf32>
    %c0_5 = arith.constant 0 : index
    %c0_6 = arith.constant 0 : index
    %5 = vector.load %arg4[%c0_5, %c0_6] : memref<1x32xbf16, #tpu.memory_space<vmem>>, vector<1x32xbf16>
    %6 = arith.extf %5 : vector<1x32xbf16> to vector<1x32xf32>
    %7 = vector.broadcast %4 : vector<16x1xf32> to vector<16x32xf32>
    %8 = vector.broadcast %6 : vector<1x32xf32> to vector<16x32xf32>
    %9 = arith.mulf %7, %8 : vector<16x32xf32>
    %10 = arith.addf %2, %9 : vector<16x32xf32>
    %c0_7 = arith.constant 0 : index
    %c0_8 = arith.constant 0 : index
    %11 = vector.load %arg7[%c0_7, %c0_8] : memref<1x32xf32, #tpu.memory_space<vmem>>, vector<1x32xf32>
    %12 = vector.broadcast %11 : vector<1x32xf32> to vector<16x32xf32>
    %13 = arith.addf %10, %12 : vector<16x32xf32>
    %cst_9 = arith.constant 0.000000e+00 : f32
    %14 = vector.broadcast %cst_9 : f32 to vector<16x32xf32>
    %15 = arith.maximumf %13, %14 : vector<16x32xf32>
    %16 = arith.truncf %15 : vector<16x32xf32> to vector<16x32xbf16>
    %c0_10 = arith.constant 0 : index
    %c0_11 = arith.constant 0 : index
    %17 = vector.load %arg5[%c0_10, %c0_11] : memref<32x32xbf16, #tpu.memory_space<vmem>>, vector<32x32xbf16>
    %cst_12 = arith.constant dense<0.000000e+00> : vector<16x32xf32>
    %18 = tpu.matmul %16, %17, %cst_12 {dimension_numbers = #tpu.dot_dimension_numbers<[1], [0], [0], [1], [0, 0, 1, 1], [], []>} : vector<16x32xbf16>, vector<32x32xbf16>, vector<16x32xf32> -> vector<16x32xf32>
    %c0_13 = arith.constant 0 : index
    %c0_14 = arith.constant 0 : index
    %19 = vector.load %arg8[%c0_13, %c0_14] : memref<1x32xf32, #tpu.memory_space<vmem>>, vector<1x32xf32>
    %20 = vector.broadcast %19 : vector<1x32xf32> to vector<16x32xf32>
    %21 = arith.addf %18, %20 : vector<16x32xf32>
    %cst_15 = arith.constant 0.000000e+00 : f32
    %22 = vector.broadcast %cst_15 : f32 to vector<16x32xf32>
    %23 = arith.maximumf %21, %22 : vector<16x32xf32>
    %24 = arith.truncf %23 : vector<16x32xf32> to vector<16x32xbf16>
    %c0_16 = arith.constant 0 : index
    %c0_17 = arith.constant 0 : index
    %25 = vector.load %arg6[%c0_16, %c0_17] : memref<32x128xbf16, #tpu.memory_space<vmem>>, vector<32x128xbf16>
    %cst_18 = arith.constant dense<0.000000e+00> : vector<16x128xf32>
    %26 = tpu.matmul %24, %25, %cst_18 {dimension_numbers = #tpu.dot_dimension_numbers<[1], [0], [0], [1], [0, 0, 1, 1], [], []>} : vector<16x32xbf16>, vector<32x128xbf16>, vector<16x128xf32> -> vector<16x128xf32>
    %c0_19 = arith.constant 0 : index
    %c0_20 = arith.constant 0 : index
    %27 = vector.load %arg9[%c0_19, %c0_20] : memref<1x128xf32, #tpu.memory_space<vmem>>, vector<1x128xf32>
    %28 = vector.broadcast %27 : vector<1x128xf32> to vector<16x128xf32>
    %29 = arith.addf %26, %28 : vector<16x128xf32>
    %c0_21 = arith.constant 0 : index
    %c0_22 = arith.constant 0 : index
    %30 = vector.load %arg10[%c0_21, %c0_22] : memref<1x128xf32, #tpu.memory_space<vmem>>, vector<1x128xf32>
    %31 = vector.broadcast %30 : vector<1x128xf32> to vector<16x128xf32>
    %32 = arith.maximumf %29, %31 : vector<16x128xf32>
    %c0_23 = arith.constant 0 : index
    %c0_24 = arith.constant 0 : index
    %33 = vector.load %arg11[%c0_23, %c0_24] : memref<1x128xf32, #tpu.memory_space<vmem>>, vector<1x128xf32>
    %34 = vector.broadcast %33 : vector<1x128xf32> to vector<16x128xf32>
    %35 = arith.minimumf %32, %34 : vector<16x128xf32>
    %c0_25 = arith.constant 0 : index
    %c0_26 = arith.constant 0 : index
    %36 = vector.load %arg12[%c0_25, %c0_26] : memref<16x128xf32, #tpu.memory_space<vmem>>, vector<16x128xf32>
    tpu.vector_store %arg12[%c0_25, %c0_26], %35 {strides = array<i32>} : memref<16x128xf32, #tpu.memory_space<vmem>>, vector<16x128xf32>,
    return
  }
  func.func @transform_0(%arg0: i32) -> (i32, i32) {
    %c0_i32 = arith.constant 0 : i32
    %c0_i32_0 = arith.constant 0 : i32
    return %arg0, %c0_i32 : i32, i32
  }
  func.func @transform_1(%arg0: i32) -> (i32, i32) {
    %c0_i32 = arith.constant 0 : i32
    %c0_i32_0 = arith.constant 0 : i32
    return %arg0, %c0_i32 : i32, i32
  }
  func.func @transform_2(%arg0: i32) -> (i32, i32) {
    %c0_i32 = arith.constant 0 : i32
    %c0_i32_0 = arith.constant 0 : i32
    %c0_i32_1 = arith.constant 0 : i32
    return %c0_i32, %c0_i32_0 : i32, i32
  }
  func.func @transform_3(%arg0: i32) -> (i32, i32) {
    %c0_i32 = arith.constant 0 : i32
    %c0_i32_0 = arith.constant 0 : i32
    %c0_i32_1 = arith.constant 0 : i32
    return %c0_i32, %c0_i32_0 : i32, i32
  }
  func.func @transform_4(%arg0: i32) -> (i32, i32) {
    %c0_i32 = arith.constant 0 : i32
    %c0_i32_0 = arith.constant 0 : i32
    %c0_i32_1 = arith.constant 0 : i32
    return %c0_i32, %c0_i32_0 : i32, i32
  }
  func.func @transform_5(%arg0: i32) -> (i32, i32) {
    %c0_i32 = arith.constant 0 : i32
    %c0_i32_0 = arith.constant 0 : i32
    %c0_i32_1 = arith.constant 0 : i32
    return %c0_i32, %c0_i32_0 : i32, i32
  }
  func.func @transform_6(%arg0: i32) -> (i32, i32) {
    %c0_i32 = arith.constant 0 : i32
    %c0_i32_0 = arith.constant 0 : i32
    %c0_i32_1 = arith.constant 0 : i32
    return %c0_i32, %c0_i32_0 : i32, i32
  }
  func.func @transform_7(%arg0: i32) -> (i32, i32) {
    %c0_i32 = arith.constant 0 : i32
    %c0_i32_0 = arith.constant 0 : i32
    %c0_i32_1 = arith.constant 0 : i32
    return %c0_i32, %c0_i32_0 : i32, i32
  }
  func.func @transform_8(%arg0: i32) -> (i32, i32) {
    %c0_i32 = arith.constant 0 : i32
    %c0_i32_0 = arith.constant 0 : i32
    %c0_i32_1 = arith.constant 0 : i32
    return %c0_i32, %c0_i32_0 : i32, i32
  }
  func.func @transform_9(%arg0: i32) -> (i32, i32) {
    %c0_i32 = arith.constant 0 : i32
    %c0_i32_0 = arith.constant 0 : i32
    %c0_i32_1 = arith.constant 0 : i32
    return %c0_i32, %c0_i32_0 : i32, i32
  }
  func.func @transform_10(%arg0: i32) -> (i32, i32) {
    %c0_i32 = arith.constant 0 : i32
    %c0_i32_0 = arith.constant 0 : i32
    %c0_i32_1 = arith.constant 0 : i32
    return %c0_i32, %c0_i32_0 : i32, i32
  }
  func.func @transform_11(%arg0: i32) -> (i32, i32) {
    %c0_i32 = arith.constant 0 : i32
    %c0_i32_0 = arith.constant 0 : i32
    return %arg0, %c0_i32 : i32, i32
  }
}

</mosaic_0001>

<llo_original>
// kernel: tpu_custom_call.1
$region0: #{tpu_custom_call.1}
  #allocation0 [shape = 'u32[]', space=smem, size = 0x4, offset = 0x4, fixed_abs, tag = 'smem constant byte address 0x4 - core index']
  #allocation1 [shape = 'u32[144,128]{1,0:T(1,128)}', space=vmem, size = 0x12000, scoped, tag = 'internal scratch']
  %s0 = inlined_call_operand.hbm [shape: bf16[16,16], index: 0, kind: input, shape index: {}]
  %s1 = inlined_call_operand.vmem [shape: bf16[16,1], index: 1, kind: input, shape index: {}]
  %s2 = inlined_call_operand.hbm [shape: bf16[16,32], index: 2, kind: input, shape index: {}]
  %s3 = inlined_call_operand.hbm [shape: bf16[1,32], index: 3, kind: input, shape index: {}]
  %s4 = inlined_call_operand.vmem [shape: bf16[32,32], index: 4, kind: input, shape index: {}]
  %s5 = inlined_call_operand.hbm [shape: bf16[32,128], index: 5, kind: input, shape index: {}]
  %s6 = inlined_call_operand.vmem [shape: f32[1,32], index: 6, kind: input, shape index: {}]
  %s7 = inlined_call_operand.vmem [shape: f32[1,32], index: 7, kind: input, shape index: {}]
  %s8 = inlined_call_operand.vmem [shape: f32[1,128], index: 8, kind: input, shape index: {}]
  %s9 = inlined_call_operand.vmem [shape: f32[1,128], index: 9, kind: input, shape index: {}]
  %s10 = inlined_call_operand.vmem [shape: f32[1,128], index: 10, kind: input, shape index: {}]
  %s11 = inlined_call_operand.hbm [shape: f32[16,128], index: 11, kind: output, shape index: {}]
  %s12 = sld [smem:[#allocation0]]
  $region70: #{tpu_custom_call.1} parent=0
    _
  %s14 = ssub.s32 1, %s12
  %s15 = scalar_select 0, %s14, %s12
  $region1: #{tpu_custom_call.1} parent=0
    #allocation2 [shape = 'u8[4096]{0}', space=vmem, size = 0x1000, scoped, tag = 'input window, operand 0, single buffered']
    #allocation3 [shape = 's32[1]{0}', space=sflag, size = 0x4, scoped, tag = 'scoped memory for tpu_custom_call.1']
    #allocation4 [shape = 's32[1]{0}', space=sflag, size = 0x4, scoped, tag = 'scoped memory for tpu_custom_call.1']
    #allocation5 [shape = 'u8[4096]{0}', space=vmem, size = 0x1000, scoped, tag = 'input window, operand 2, single buffered']
    #allocation6 [shape = 's32[1]{0}', space=sflag, size = 0x4, scoped, tag = 'scoped memory for tpu_custom_call.1']
    #allocation7 [shape = 'u8[512]{0}', space=vmem, size = 0x400, scoped, tag = 'input window, operand 3, single buffered']
    #allocation8 [shape = 'u8[8192]{0}', space=vmem, size = 0x2000, scoped, tag = 'input window, operand 5, single buffered']
    #allocation9 [shape = 's32[1]{0}', space=sflag, size = 0x4, scoped, tag = 'scoped memory for tpu_custom_call.1']
    #allocation10 [shape = 'u8[8192]{0}', space=vmem, size = 0x2000, scoped, tag = 'output window, operand 0, single buffered']
    %16 = vsyncpa [#allocation3], 0
    %17 = vsyncpa [#allocation6], 0
    %18 = vsyncpa [#allocation9], 0
    %19 = vsyncpa [#allocation4], 0
    // Predicated region
    $region2: #{tpu_custom_call.1} parent=1 // pred_check
      _
    $region3: #{tpu_custom_call.1} parent=1 // pred_check_branch
      %21 = sbr.rel (0) target = $region5
    $region4: #{tpu_custom_call.1} parent=1 // pred_region
      %s23 = ssub.s32 128, 128
      %24 = vsyncadd [#allocation3], %s23
      %s25 = sshll.u32 [#allocation2], 4
      %s26 = int_to_ptr.vmem [resolvable:$true] %s25
      %31 = dma.hbm_to_vmem [thread:$0]  %s0, 128, %s26, [#allocation3], 64, 64, 4
    $region5: #{tpu_custom_call.1} parent=1 // pred_fallthru
      _
    // Predicated region
    $region6: #{tpu_custom_call.1} parent=1 // pred_check
      _
    $region7: #{tpu_custom_call.1} parent=1 // pred_check_branch
      %33 = sbr.rel (0) target = $region9
    $region8: #{tpu_custom_call.1} parent=1 // pred_region
      _
    $region9: #{tpu_custom_call.1} parent=1 // pred_fallthru
      _
    // Predicated region
    $region10: #{tpu_custom_call.1} parent=1 // pred_check
      _
    $region11: #{tpu_custom_call.1} parent=1 // pred_check_branch
      %35 = sbr.rel (0) target = $region13
    $region12: #{tpu_custom_call.1} parent=1 // pred_region
      %s37 = ssub.s32 128, 128
      %38 = vsyncadd [#allocation6], %s37
      %s39 = sshll.u32 [#allocation5], 4
      %s40 = int_to_ptr.vmem [resolvable:$true] %s39
      %45 = dma.hbm_to_vmem [thread:$0]  %s2, 128, %s40, [#allocation6], 64, 64, 4
    $region13: #{tpu_custom_call.1} parent=1 // pred_fallthru
      _
    // Predicated region
    $region14: #{tpu_custom_call.1} parent=1 // pred_check
      _
    $region15: #{tpu_custom_call.1} parent=1 // pred_check_branch
      %47 = sbr.rel (0) target = $region17
    $region16: #{tpu_custom_call.1} parent=1 // pred_region
      %s49 = ssub.s32 16, 16
      %50 = vsyncadd [#allocation6], %s49
      %s52 = sshll.u32 [#allocation7], 4
      %s53 = int_to_ptr.vmem [resolvable:$true] %s52
      %55 = dma.hbm_to_vmem [thread:$0]  %s3, 16, %s53, [#allocation6]
    $region17: #{tpu_custom_call.1} parent=1 // pred_fallthru
      _
    // Predicated region
    $region18: #{tpu_custom_call.1} parent=1 // pred_check
      _
    $region19: #{tpu_custom_call.1} parent=1 // pred_check_branch
      %57 = sbr.rel (0) target = $region21
    $region20: #{tpu_custom_call.1} parent=1 // pred_region
      _
    $region21: #{tpu_custom_call.1} parent=1 // pred_fallthru
      _
    // Predicated region
    $region22: #{tpu_custom_call.1} parent=1 // pred_check
      _
    $region23: #{tpu_custom_call.1} parent=1 // pred_check_branch
      %59 = sbr.rel (0) target = $region25
    $region24: #{tpu_custom_call.1} parent=1 // pred_region
      %s61 = ssub.s32 256, 256
      %62 = vsyncadd [#allocation9], %s61
      %s63 = sshll.u32 [#allocation8], 4
      %s64 = int_to_ptr.vmem [resolvable:$true] %s63
      %69 = dma.hbm_to_vmem [thread:$0]  %s5, 256, %s64, [#allocation9], 64, 64, 4
    $region25: #{tpu_custom_call.1} parent=1 // pred_fallthru
      _
    // Predicated region
    $region26: #{tpu_custom_call.1} parent=1 // pred_check
      _
    $region27: #{tpu_custom_call.1} parent=1 // pred_check_branch
      %71 = sbr.rel (0) target = $region29
    $region28: #{tpu_custom_call.1} parent=1 // pred_region
      _
    $region29: #{tpu_custom_call.1} parent=1 // pred_fallthru
      _
    // Predicated region
    $region30: #{tpu_custom_call.1} parent=1 // pred_check
      _
    $region31: #{tpu_custom_call.1} parent=1 // pred_check_branch
      %73 = sbr.rel (0) target = $region33
    $region32: #{tpu_custom_call.1} parent=1 // pred_region
      _
    $region33: #{tpu_custom_call.1} parent=1 // pred_fallthru
      _
    // Predicated region
    $region34: #{tpu_custom_call.1} parent=1 // pred_check
      _
    $region35: #{tpu_custom_call.1} parent=1 // pred_check_branch
      %75 = sbr.rel (0) target = $region37
    $region36: #{tpu_custom_call.1} parent=1 // pred_region
      _
    $region37: #{tpu_custom_call.1} parent=1 // pred_fallthru
      _
    // Predicated region
    $region38: #{tpu_custom_call.1} parent=1 // pred_check
      _
    $region39: #{tpu_custom_call.1} parent=1 // pred_check_branch
      %77 = sbr.rel (0) target = $region41
    $region40: #{tpu_custom_call.1} parent=1 // pred_region
      _
    $region41: #{tpu_custom_call.1} parent=1 // pred_fallthru
      _
    // Predicated region
    $region42: #{tpu_custom_call.1} parent=1 // pred_check
      _
    $region43: #{tpu_custom_call.1} parent=1 // pred_check_branch
      %79 = sbr.rel (0) target = $region45
    $region44: #{tpu_custom_call.1} parent=1 // pred_region
      _
    $region45: #{tpu_custom_call.1} parent=1 // pred_fallthru
      _
    // Predicated region
    $region46: #{tpu_custom_call.1} parent=1 // pred_check
      _
    $region47: #{tpu_custom_call.1} parent=1 // pred_check_branch
      %81 = sbr.rel (0) target = $region49
    $region48: #{tpu_custom_call.1} parent=1 // pred_region
      %82 = dma.done [#allocation3], 128
    $region49: #{tpu_custom_call.1} parent=1 // pred_fallthru
      _
    // Predicated region
    $region50: #{tpu_custom_call.1} parent=1 // pred_check
      _
    $region51: #{tpu_custom_call.1} parent=1 // pred_check_branch
      %84 = sbr.rel (0) target = $region53
    $region52: #{tpu_custom_call.1} parent=1 // pred_region
      %85 = dma.done [#allocation6], 128
    $region53: #{tpu_custom_call.1} parent=1 // pred_fallthru
      _
    // Predicated region
    $region54: #{tpu_custom_call.1} parent=1 // pred_check
      _
    $region55: #{tpu_custom_call.1} parent=1 // pred_check_branch
      %87 = sbr.rel (0) target = $region57
    $region56: #{tpu_custom_call.1} parent=1 // pred_region
      %88 = dma.done [#allocation6], 16
    $region57: #{tpu_custom_call.1} parent=1 // pred_fallthru
      _
    // Predicated region
    $region58: #{tpu_custom_call.1} parent=1 // pred_check
      _
    $region59: #{tpu_custom_call.1} parent=1 // pred_check_branch
      %90 = sbr.rel (0) target = $region61
    $region60: #{tpu_custom_call.1} parent=1 // pred_region
      %91 = dma.done [#allocation9], 256
    $region61: #{tpu_custom_call.1} parent=1 // pred_fallthru
      _
    %v93 = vld [vmem:[#allocation2] sm:$0xf]
    %v94 = vld [vmem:[#allocation2 + $0x4] sm:$0xf]
    %v95 = vld [vmem:[#allocation5] sm:$0xf]
    %v96 = vld [vmem:[#allocation5 + $0x4] sm:$0xf]
    %v97 = vld [vmem:[%s1] sm:$0xf]
    %v98 = vld [vmem:[%s1 + $0x4] sm:$0xf]
    %v99 = vunpack.c.l.bf16 %v97
    %v100 = vunpack.c.l.bf16 %v98
    %v101 = vld [vmem:[#allocation7] sm:$0x1]
    %v102 = vunpack.c.l.bf16 %v101
    %104 = vset.pattern.permute.xlu0 0
    %105 = vperm.xlu0 %104, %v99
    %v106 = vpop.permute.xlu0 %105
    %109 = vset.pattern.permute.xlu0 0
    %110 = vperm.xlu0 %109, %v100
    %v111 = vpop.permute.xlu0 %110
    %v113 = vlaneseq
    %v114 = vshrl.u32 %v113, 7
    %v115 = vsub.s32 0, %v114
    %v116 = vrot.slane %v102, %v115
    %v117 = vmul.f32 %v106, %v116
    %v118 = vmul.f32 %v111, %v116
    %v121 = vunpack.c.l.b16 %v93
    %v122 = vunpack.c.l.b16 %v94
    %v123 = vpack.c.b16 %v122, %v121
    %v126 = vunpack.c.l.b16 %v95
    %v127 = vunpack.c.l.b16 %v96
    %v128 = vpack.c.b16 %v127, %v126
    %vm130 = vcmask 130048
    %v132 = vsel %vm130, %v123, 0
    %134 = vmatprep.subr.bf16.mxu0 0
    %135 = vmatpush1.bf16.msra.mxu0 0
    %136 = vmatprep.subr.bf16.mxu0 0
    %137 = vmatpush1.bf16.msra.mxu0 0
    %138 = vmatprep.subr.bf16.mxu0 0
    %139 = vmatpush1.bf16.msra.mxu0 0
    %140 = vmatprep.subr.bf16.mxu0 0
    %141 = vmatpush1.bf16.msra.mxu0 0
    %142 = vmatprep.subr.bf16.mxu0 0
    %143 = vmatpush1.bf16.msra.mxu0 0
    %144 = vmatprep.subr.bf16.mxu0 0
    %145 = vmatpush1.bf16.msra.mxu0 0
    %146 = vmatprep.subr.bf16.mxu0 0
    %147 = vmatpush1.bf16.msra.mxu0 0
    %148 = vmatprep.subr.bf16.mxu0 0
    %149 = vmatpush1.bf16.msra.mxu0 %v128
    %150 = vmatprep.subr.bf16.mxu0 0
    %151 = vmatpush2.bf16.msra.mxu0 0
    %152 = vmatprep.subr.bf16.mxu0 0
    %153 = vmatpush2.bf16.msra.mxu0 0
    %154 = vmatprep.subr.bf16.mxu0 0
    %155 = vmatpush2.bf16.msra.mxu0 0
    %156 = vmatprep.subr.bf16.mxu0 0
    %157 = vmatpush2.bf16.msra.mxu0 0
    %158 = vmatprep.subr.bf16.mxu0 0
    %159 = vmatpush2.bf16.msra.mxu0 0
    %160 = vmatprep.subr.bf16.mxu0 0
    %161 = vmatpush2.bf16.msra.mxu0 0
    %162 = vmatprep.subr.bf16.mxu0 0
    %163 = vmatpush2.bf16.msra.mxu0 0
    %164 = vmatprep.subr.bf16.mxu0 0
    %165 = vmatpush2.bf16.msra.mxu0 0
    %166 = vmatprep.mubr.bf16.mxu0 0
    %167 = vmatmul.mubr.bf16.gmra.mxu0 %v132
    %v168 = vpop.f32.mrf.mxu0
    %v169 = vadd.f32 %v117, %v168
    %v170 = vpop.f32.mrf.mxu0
    %v171 = vpop.f32.mrf.mxu0
    %v172 = vadd.f32 %v118, %v171
    %v173 = vpop.f32.mrf.mxu0
    %174 = vdwg.mxu0
    %v175 = vld [vmem:[%s6] sm:$0x1]
    %v177 = vlaneseq
    %v178 = vshrl.u32 %v177, 7
    %v179 = vsub.s32 0, %v178
    %v180 = vrot.slane %v175, %v179
    %v182 = vadd.f32 %v169, %v180
    %v183 = vadd.f32 %v172, %v180
    %v184 = vmax.f32 %v182, 0.0
    %v185 = vmax.f32 %v183, 0.0
    %v186 = vpack.c.bf16 %v185, %v184
    %v187 = vld [vmem:[%s4] sm:$0xf]
    %v188 = vld [vmem:[%s4 + $0x4] sm:$0xf]
    %v189 = vld [vmem:[%s4 + $0x8] sm:$0xf]
    %v190 = vld [vmem:[%s4 + $0xc] sm:$0xf]
    %v191 = vld [vmem:[%s7] sm:$0x1]
    %v193 = vlaneseq
    %v194 = vshrl.u32 %v193, 7
    %v195 = vsub.s32 0, %v194
    %v196 = vrot.slane %v191, %v195
    %v202 = vunpack.c.l.b16 %v187
    %v203 = vunpack.c.l.b16 %v188
    %v204 = vunpack.c.l.b16 %v189
    %v205 = vunpack.c.l.b16 %v190
    %v206 = vpack.c.b16 %v203, %v202
    %v207 = vpack.c.b16 %v205, %v204
    %vm210 = vcmask 261120
    %v212 = vsel %vm210, %v186, 0
    %214 = vmatprep.subr.bf16.mxu0 0
    %215 = vmatpush1.bf16.msra.mxu0 0
    %216 = vmatprep.subr.bf16.mxu0 0
    %217 = vmatpush1.bf16.msra.mxu0 0
    %218 = vmatprep.subr.bf16.mxu0 0
    %219 = vmatpush1.bf16.msra.mxu0 0
    %220 = vmatprep.subr.bf16.mxu0 0
    %221 = vmatpush1.bf16.msra.mxu0 0
    %222 = vmatprep.subr.bf16.mxu0 0
    %223 = vmatpush1.bf16.msra.mxu0 0
    %224 = vmatprep.subr.bf16.mxu0 0
    %225 = vmatpush1.bf16.msra.mxu0 0
    %226 = vmatprep.subr.bf16.mxu0 0
    %227 = vmatpush1.bf16.msra.mxu0 %v207
    %228 = vmatprep.subr.bf16.mxu0 0
    %229 = vmatpush1.bf16.msra.mxu0 %v206
    %230 = vmatprep.subr.bf16.mxu0 0
    %231 = vmatpush2.bf16.msra.mxu0 0
    %232 = vmatprep.subr.bf16.mxu0 0
    %233 = vmatpush2.bf16.msra.mxu0 0
    %234 = vmatprep.subr.bf16.mxu0 0
    %235 = vmatpush2.bf16.msra.mxu0 0
    %236 = vmatprep.subr.bf16.mxu0 0
    %237 = vmatpush2.bf16.msra.mxu0 0
    %238 = vmatprep.subr.bf16.mxu0 0
    %239 = vmatpush2.bf16.msra.mxu0 0
    %240 = vmatprep.subr.bf16.mxu0 0
    %241 = vmatpush2.bf16.msra.mxu0 0
    %242 = vmatprep.subr.bf16.mxu0 0
    %243 = vmatpush2.bf16.msra.mxu0 0
    %244 = vmatprep.subr.bf16.mxu0 0
    %245 = vmatpush2.bf16.msra.mxu0 0
    %246 = vmatprep.mubr.bf16.mxu0 0
    %247 = vmatmul.mubr.bf16.gmra.mxu0 %v212
    %v248 = vpop.f32.mrf.mxu0
    %v249 = vadd.f32 %v196, %v248
    %v250 = vpop.f32.mrf.mxu0
    %v251 = vpop.f32.mrf.mxu0
    %v252 = vadd.f32 %v196, %v251
    %v253 = vpop.f32.mrf.mxu0
    %254 = vdwg.mxu0
    %v255 = vmax.f32 %v249, 0.0
    %v256 = vmax.f32 %v252, 0.0
    %v257 = vpack.c.bf16 %v256, %v255
    %v258 = vld [vmem:[#allocation8] sm:$0xf]
    %v259 = vld [vmem:[#allocation8 + $0x4] sm:$0xf]
    %v260 = vld [vmem:[#allocation8 + $0x8] sm:$0xf]
    %v261 = vld [vmem:[#allocation8 + $0xc] sm:$0xf]
    %v262 = vld [vmem:[%s8] sm:$0x1]
    %v264 = vlaneseq
    %v265 = vshrl.u32 %v264, 7
    %v266 = vsub.s32 0, %v265
    %v267 = vrot.slane %v262, %v266
    %v273 = vunpack.c.l.b16 %v258
    %v274 = vunpack.c.l.b16 %v259
    %v275 = vunpack.c.l.b16 %v260
    %v276 = vunpack.c.l.b16 %v261
    %v277 = vpack.c.b16 %v274, %v273
    %v278 = vpack.c.b16 %v276, %v275
    %v282 = vsel %vm210, %v257, 0
    %284 = vmatprep.subr.bf16.mxu0 0
    %285 = vmatpush1.bf16.msra.mxu0 0
    %286 = vmatprep.subr.bf16.mxu0 0
    %287 = vmatpush1.bf16.msra.mxu0 0
    %288 = vmatprep.subr.bf16.mxu0 0
    %289 = vmatpush1.bf16.msra.mxu0 0
    %290 = vmatprep.subr.bf16.mxu0 0
    %291 = vmatpush1.bf16.msra.mxu0 0
    %292 = vmatprep.subr.bf16.mxu0 0
    %293 = vmatpush1.bf16.msra.mxu0 0
    %294 = vmatprep.subr.bf16.mxu0 0
    %295 = vmatpush1.bf16.msra.mxu0 0
    %296 = vmatprep.subr.bf16.mxu0 0
    %297 = vmatpush1.bf16.msra.mxu0 %v278
    %298 = vmatprep.subr.bf16.mxu0 0
    %299 = vmatpush1.bf16.msra.mxu0 %v277
    %300 = vmatprep.subr.bf16.mxu0 0
    %301 = vmatpush2.bf16.msra.mxu0 0
    %302 = vmatprep.subr.bf16.mxu0 0
    %303 = vmatpush2.bf16.msra.mxu0 0
    %304 = vmatprep.subr.bf16.mxu0 0
    %305 = vmatpush2.bf16.msra.mxu0 0
    %306 = vmatprep.subr.bf16.mxu0 0
    %307 = vmatpush2.bf16.msra.mxu0 0
    %308 = vmatprep.subr.bf16.mxu0 0
    %309 = vmatpush2.bf16.msra.mxu0 0
    %310 = vmatprep.subr.bf16.mxu0 0
    %311 = vmatpush2.bf16.msra.mxu0 0
    %312 = vmatprep.subr.bf16.mxu0 0
    %313 = vmatpush2.bf16.msra.mxu0 0
    %314 = vmatprep.subr.bf16.mxu0 0
    %315 = vmatpush2.bf16.msra.mxu0 0
    %316 = vmatprep.mubr.bf16.mxu0 0
    %317 = vmatmul.mubr.bf16.gmra.mxu0 %v282
    %v318 = vpop.f32.mrf.mxu0
    %v319 = vadd.f32 %v267, %v318
    %v320 = vpop.f32.mrf.mxu0
    %v321 = vpop.f32.mrf.mxu0
    %v322 = vadd.f32 %v267, %v321
    %v323 = vpop.f32.mrf.mxu0
    %324 = vdwg.mxu0
    %v325 = vld [vmem:[%s9] sm:$0x1]
    %v327 = vlaneseq
    %v328 = vshrl.u32 %v327, 7
    %v329 = vsub.s32 0, %v328
    %v330 = vrot.slane %v325, %v329
    %v332 = vmax.f32 %v319, %v330
    %v333 = vmax.f32 %v322, %v330
    %v334 = vld [vmem:[%s10] sm:$0x1]
    %v336 = vlaneseq
    %v337 = vshrl.u32 %v336, 7
    %v338 = vsub.s32 0, %v337
    %v339 = vrot.slane %v334, %v338
    %v341 = vmin.f32 %v332, %v339
    %v342 = vmin.f32 %v333, %v339
    %343 = vst [vmem:[#allocation10] sm:$0xff] %v341
    %344 = vst [vmem:[#allocation10 + $0x8] sm:$0xff] %v342
    // Predicated region
    $region62: #{tpu_custom_call.1} parent=1 // pred_check
      _
    $region63: #{tpu_custom_call.1} parent=1 // pred_check_branch
      %346 = sbr.rel (0) target = $region65
    $region64: #{tpu_custom_call.1} parent=1 // pred_region
      %s348 = ssub.s32 256, 256
      %349 = vsyncadd [#allocation4], %s348
      %s350 = sshll.u32 [#allocation10], 4
      %s351 = int_to_ptr.vmem [resolvable:$true] %s350
      %356 = dma.vmem_to_hbm [thread:$0]  %s351, 256, %s11, [#allocation4], 128, 128, 8
    $region65: #{tpu_custom_call.1} parent=1 // pred_fallthru
      _
    // Predicated region
    $region66: #{tpu_custom_call.1} parent=1 // pred_check
      _
    $region67: #{tpu_custom_call.1} parent=1 // pred_check_branch
      %358 = sbr.rel (0) target = $region69
    $region68: #{tpu_custom_call.1} parent=1 // pred_region
      %359 = dma.done [#allocation4], 256
    $region69: #{tpu_custom_call.1} parent=1 // pred_fallthru
      _
    %360 = vsyncpa [#allocation3], 1
    %361 = vsyncpa [#allocation6], 1
    %362 = vsyncpa [#allocation9], 1
    %363 = vsyncpa [#allocation4], 1

// kernel: tpu_custom_call.1
$region0: #{tpu_custom_call.1}
  #allocation0 [shape = 'u32[]', space=smem, size = 0x4, offset = 0x4, fixed_abs, tag = 'smem constant byte address 0x4 - core index']
  #allocation1 [shape = 'u32[144,128]{1,0:T(1,128)}', space=vmem, size = 0x12000, scoped, tag = 'internal scratch']
  %s0 = inlined_call_operand.hbm [shape: bf16[16,16], index: 0, kind: input, shape index: {}]
  %s1 = inlined_call_operand.vmem [shape: bf16[16,1], index: 1, kind: input, shape index: {}]
  %s2 = inlined_call_operand.hbm [shape: bf16[16,32], index: 2, kind: input, shape index: {}]
  %s3 = inlined_call_operand.hbm [shape: bf16[1,32], index: 3, kind: input, shape index: {}]
  %s4 = inlined_call_operand.vmem [shape: bf16[32,32], index: 4, kind: input, shape index: {}]
  %s5 = inlined_call_operand.hbm [shape: bf16[32,128], index: 5, kind: input, shape index: {}]
  %s6 = inlined_call_operand.vmem [shape: f32[1,32], index: 6, kind: input, shape index: {}]
  %s7 = inlined_call_operand.vmem [shape: f32[1,32], index: 7, kind: input, shape index: {}]
  %s8 = inlined_call_operand.vmem [shape: f32[1,128], index: 8, kind: input, shape index: {}]
  %s9 = inlined_call_operand.vmem [shape: f32[1,128], index: 9, kind: input, shape index: {}]
  %s10 = inlined_call_operand.vmem [shape: f32[1,128], index: 10, kind: input, shape index: {}]
  %s11 = inlined_call_operand.hbm [shape: f32[16,128], index: 11, kind: output, shape index: {}]
  %s12 = sld [smem:[#allocation0]]
  $region70: #{tpu_custom_call.1} parent=0
    _
  %s14 = ssub.s32 1, %s12
  %s15 = scalar_select 0, %s14, %s12
  $region1: #{tpu_custom_call.1} parent=0
    #allocation2 [shape = 'u8[4096]{0}', space=vmem, size = 0x1000, scoped, tag = 'input window, operand 0, single buffered']
    #allocation3 [shape = 's32[1]{0}', space=sflag, size = 0x4, scoped, tag = 'scoped memory for tpu_custom_call.1']
    #allocation4 [shape = 's32[1]{0}', space=sflag, size = 0x4, scoped, tag = 'scoped memory for tpu_custom_call.1']
    #allocation5 [shape = 'u8[4096]{0}', space=vmem, size = 0x1000, scoped, tag = 'input window, operand 2, single buffered']
    #allocation6 [shape = 's32[1]{0}', space=sflag, size = 0x4, scoped, tag = 'scoped memory for tpu_custom_call.1']
    #allocation7 [shape = 'u8[512]{0}', space=vmem, size = 0x400, scoped, tag = 'input window, operand 3, single buffered']
    #allocation8 [shape = 'u8[8192]{0}', space=vmem, size = 0x2000, scoped, tag = 'input window, operand 5, single buffered']
    #allocation9 [shape = 's32[1]{0}', space=sflag, size = 0x4, scoped, tag = 'scoped memory for tpu_custom_call.1']
    #allocation10 [shape = 'u8[8192]{0}', space=vmem, size = 0x2000, scoped, tag = 'output window, operand 0, single buffered']
    %16 = vsyncpa [#allocation3], 0
    %17 = vsyncpa [#allocation6], 0
    %18 = vsyncpa [#allocation9], 0
    %19 = vsyncpa [#allocation4], 0
    // Predicated region
    $region2: #{tpu_custom_call.1} parent=1 // pred_check
      _
    $region3: #{tpu_custom_call.1} parent=1 // pred_check_branch
      %21 = sbr.rel (0) target = $region5
    $region4: #{tpu_custom_call.1} parent=1 // pred_region
      %s23 = ssub.s32 128, 128
      %24 = vsyncadd [#allocation3], %s23
      %s25 = sshll.u32 [#allocation2], 4
      %s26 = int_to_ptr.vmem [resolvable:$true] %s25
      %31 = dma.hbm_to_vmem [thread:$0]  %s0, 128, %s26, [#allocation3], 64, 64, 4
    $region5: #{tpu_custom_call.1} parent=1 // pred_fallthru
      _
    // Predicated region
    $region6: #{tpu_custom_call.1} parent=1 // pred_check
      _
    $region7: #{tpu_custom_call.1} parent=1 // pred_check_branch
      %33 = sbr.rel (0) target = $region9
    $region8: #{tpu_custom_call.1} parent=1 // pred_region
      _
    $region9: #{tpu_custom_call.1} parent=1 // pred_fallthru
      _
    // Predicated region
    $region10: #{tpu_custom_call.1} parent=1 // pred_check
      _
    $region11: #{tpu_custom_call.1} parent=1 // pred_check_branch
      %35 = sbr.rel (0) target = $region13
    $region12: #{tpu_custom_call.1} parent=1 // pred_region
      %s37 = ssub.s32 128, 128
      %38 = vsyncadd [#allocation6], %s37
      %s39 = sshll.u32 [#allocation5], 4
      %s40 = int_to_ptr.vmem [resolvable:$true] %s39
      %45 = dma.hbm_to_vmem [thread:$0]  %s2, 128, %s40, [#allocation6], 64, 64, 4
    $region13: #{tpu_custom_call.1} parent=1 // pred_fallthru
      _
    // Predicated region
    $region14: #{tpu_custom_call.1} parent=1 // pred_check
      _
    $region15: #{tpu_custom_call.1} parent=1 // pred_check_branch
      %47 = sbr.rel (0) target = $region17
    $region16: #{tpu_custom_call.1} parent=1 // pred_region
      %s49 = ssub.s32 16, 16
      %50 = vsyncadd [#allocation6], %s49
      %s52 = sshll.u32 [#allocation7], 4
      %s53 = int_to_ptr.vmem [resolvable:$true] %s52
      %55 = dma.hbm_to_vmem [thread:$0]  %s3, 16, %s53, [#allocation6]
    $region17: #{tpu_custom_call.1} parent=1 // pred_fallthru
      _
    // Predicated region
    $region18: #{tpu_custom_call.1} parent=1 // pred_check
      _
    $region19: #{tpu_custom_call.1} parent=1 // pred_check_branch
      %57 = sbr.rel (0) target = $region21
    $region20: #{tpu_custom_call.1} parent=1 // pred_region
      _
    $region21: #{tpu_custom_call.1} parent=1 // pred_fallthru
      _
    // Predicated region
    $region22: #{tpu_custom_call.1} parent=1 // pred_check
      _
    $region23: #{tpu_custom_call.1} parent=1 // pred_check_branch
      %59 = sbr.rel (0) target = $region25
    $region24: #{tpu_custom_call.1} parent=1 // pred_region
      %s61 = ssub.s32 256, 256
      %62 = vsyncadd [#allocation9], %s61
      %s63 = sshll.u32 [#allocation8], 4
      %s64 = int_to_ptr.vmem [resolvable:$true] %s63
      %69 = dma.hbm_to_vmem [thread:$0]  %s5, 256, %s64, [#allocation9], 64, 64, 4
    $region25: #{tpu_custom_call.1} parent=1 // pred_fallthru
      _
    // Predicated region
    $region26: #{tpu_custom_call.1} parent=1 // pred_check
      _
    $region27: #{tpu_custom_call.1} parent=1 // pred_check_branch
      %71 = sbr.rel (0) target = $region29
    $region28: #{tpu_custom_call.1} parent=1 // pred_region
      _
    $region29: #{tpu_custom_call.1} parent=1 // pred_fallthru
      _
    // Predicated region
    $region30: #{tpu_custom_call.1} parent=1 // pred_check
      _
    $region31: #{tpu_custom_call.1} parent=1 // pred_check_branch
      %73 = sbr.rel (0) target = $region33
    $region32: #{tpu_custom_call.1} parent=1 // pred_region
      _
    $region33: #{tpu_custom_call.1} parent=1 // pred_fallthru
      _
    // Predicated region
    $region34: #{tpu_custom_call.1} parent=1 // pred_check
      _
    $region35: #{tpu_custom_call.1} parent=1 // pred_check_branch
      %75 = sbr.rel (0) target = $region37
    $region36: #{tpu_custom_call.1} parent=1 // pred_region
      _
    $region37: #{tpu_custom_call.1} parent=1 // pred_fallthru
      _
    // Predicated region
    $region38: #{tpu_custom_call.1} parent=1 // pred_check
      _
    $region39: #{tpu_custom_call.1} parent=1 // pred_check_branch
      %77 = sbr.rel (0) target = $region41
    $region40: #{tpu_custom_call.1} parent=1 // pred_region
      _
    $region41: #{tpu_custom_call.1} parent=1 // pred_fallthru
      _
    // Predicated region
    $region42: #{tpu_custom_call.1} parent=1 // pred_check
      _
    $region43: #{tpu_custom_call.1} parent=1 // pred_check_branch
      %79 = sbr.rel (0) target = $region45
    $region44: #{tpu_custom_call.1} parent=1 // pred_region
      _
    $region45: #{tpu_custom_call.1} parent=1 // pred_fallthru
      _
    // Predicated region
    $region46: #{tpu_custom_call.1} parent=1 // pred_check
      _
    $region47: #{tpu_custom_call.1} parent=1 // pred_check_branch
      %81 = sbr.rel (0) target = $region49
    $region48: #{tpu_custom_call.1} parent=1 // pred_region
      %82 = dma.done [#allocation3], 128
    $region49: #{tpu_custom_call.1} parent=1 // pred_fallthru
      _
    // Predicated region
    $region50: #{tpu_custom_call.1} parent=1 // pred_check
      _
    $region51: #{tpu_custom_call.1} parent=1 // pred_check_branch
      %84 = sbr.rel (0) target = $region53
    $region52: #{tpu_custom_call.1} parent=1 // pred_region
      %85 = dma.done [#allocation6], 128
    $region53: #{tpu_custom_call.1} parent=1 // pred_fallthru
      _
    // Predicated region
    $region54: #{tpu_custom_call.1} parent=1 // pred_check
      _
    $region55: #{tpu_custom_call.1} parent=1 // pred_check_branch
      %87 = sbr.rel (0) target = $region57
    $region56: #{tpu_custom_call.1} parent=1 // pred_region
      %88 = dma.done [#allocation6], 16
    $region57: #{tpu_custom_call.1} parent=1 // pred_fallthru
      _
    // Predicated region
    $region58: #{tpu_custom_call.1} parent=1 // pred_check
      _
    $region59: #{tpu_custom_call.1} parent=1 // pred_check_branch
      %90 = sbr.rel (0) target = $region61
    $region60: #{tpu_custom_call.1} parent=1 // pred_region
      %91 = dma.done [#allocation9], 256
    $region61: #{tpu_custom_call.1} parent=1 // pred_fallthru
      _
    %v93 = vld [vmem:[#allocation2] sm:$0xf]
    %v94 = vld [vmem:[#allocation2 + $0x4] sm:$0xf]
    %v95 = vld [vmem:[#allocation5] sm:$0xf]
    %v96 = vld [vmem:[#allocation5 + $0x4] sm:$0xf]
    %v97 = vld [vmem:[%s1] sm:$0xf]
    %v98 = vld [vmem:[%s1 + $0x4] sm:$0xf]
    %v99 = vunpack.c.l.bf16 %v97
    %v100 = vunpack.c.l.bf16 %v98
    %v101 = vld [vmem:[#allocation7] sm:$0x1]
    %v102 = vunpack.c.l.bf16 %v101
    %104 = vset.pattern.permute.xlu0 0
    %105 = vperm.xlu0 %104, %v99
    %v106 = vpop.permute.xlu0 %105
    %109 = vset.pattern.permute.xlu0 0
    %110 = vperm.xlu0 %109, %v100
    %v111 = vpop.permute.xlu0 %110
    %v113 = vlaneseq
    %v114 = vshrl.u32 %v113, 7
    %v115 = vsub.s32 0, %v114
    %v116 = vrot.slane %v102, %v115
    %v117 = vmul.f32 %v106, %v116
    %v118 = vmul.f32 %v111, %v116
    %v121 = vunpack.c.l.b16 %v93
    %v122 = vunpack.c.l.b16 %v94
    %v123 = vpack.c.b16 %v122, %v121
    %v126 = vunpack.c.l.b16 %v95
    %v127 = vunpack.c.l.b16 %v96
    %v128 = vpack.c.b16 %v127, %v126
    %vm130 = vcmask 130048
    %v132 = vsel %vm130, %v123, 0
    %134 = vmatprep.subr.bf16.mxu0 0
    %135 = vmatpush1.bf16.msra.mxu0 0
    %136 = vmatprep.subr.bf16.mxu0 0
    %137 = vmatpush1.bf16.msra.mxu0 0
    %138 = vmatprep.subr.bf16.mxu0 0
    %139 = vmatpush1.bf16.msra.mxu0 0
    %140 = vmatprep.subr.bf16.mxu0 0
    %141 = vmatpush1.bf16.msra.mxu0 0
    %142 = vmatprep.subr.bf16.mxu0 0
    %143 = vmatpush1.bf16.msra.mxu0 0
    %144 = vmatprep.subr.bf16.mxu0 0
    %145 = vmatpush1.bf16.msra.mxu0 0
    %146 = vmatprep.subr.bf16.mxu0 0
    %147 = vmatpush1.bf16.msra.mxu0 0
    %148 = vmatprep.subr.bf16.mxu0 0
    %149 = vmatpush1.bf16.msra.mxu0 %v128
    %150 = vmatprep.subr.bf16.mxu0 0
    %151 = vmatpush2.bf16.msra.mxu0 0
    %152 = vmatprep.subr.bf16.mxu0 0
    %153 = vmatpush2.bf16.msra.mxu0 0
    %154 = vmatprep.subr.bf16.mxu0 0
    %155 = vmatpush2.bf16.msra.mxu0 0
    %156 = vmatprep.subr.bf16.mxu0 0
    %157 = vmatpush2.bf16.msra.mxu0 0
    %158 = vmatprep.subr.bf16.mxu0 0
    %159 = vmatpush2.bf16.msra.mxu0 0
    %160 = vmatprep.subr.bf16.mxu0 0
    %161 = vmatpush2.bf16.msra.mxu0 0
    %162 = vmatprep.subr.bf16.mxu0 0
    %163 = vmatpush2.bf16.msra.mxu0 0
    %164 = vmatprep.subr.bf16.mxu0 0
    %165 = vmatpush2.bf16.msra.mxu0 0
    %166 = vmatprep.mubr.bf16.mxu0 0
    %167 = vmatmul.mubr.bf16.gmra.mxu0 %v132
    %v168 = vpop.f32.mrf.mxu0
    %v169 = vadd.f32 %v117, %v168
    %v170 = vpop.f32.mrf.mxu0
    %v171 = vpop.f32.mrf.mxu0
    %v172 = vadd.f32 %v118, %v171
    %v173 = vpop.f32.mrf.mxu0
    %174 = vdwg.mxu0
    %v175 = vld [vmem:[%s6] sm:$0x1]
    %v177 = vlaneseq
    %v178 = vshrl.u32 %v177, 7
    %v179 = vsub.s32 0, %v178
    %v180 = vrot.slane %v175, %v179
    %v182 = vadd.f32 %v169, %v180
    %v183 = vadd.f32 %v172, %v180
    %v184 = vmax.f32 %v182, 0.0
    %v185 = vmax.f32 %v183, 0.0
    %v186 = vpack.c.bf16 %v185, %v184
    %v187 = vld [vmem:[%s4] sm:$0xf]
    %v188 = vld [vmem:[%s4 + $0x4] sm:$0xf]
    %v189 = vld [vmem:[%s4 + $0x8] sm:$0xf]
    %v190 = vld [vmem:[%s4 + $0xc] sm:$0xf]
    %v191 = vld [vmem:[%s7] sm:$0x1]
    %v193 = vlaneseq
    %v194 = vshrl.u32 %v193, 7
    %v195 = vsub.s32 0, %v194
    %v196 = vrot.slane %v191, %v195
    %v202 = vunpack.c.l.b16 %v187
    %v203 = vunpack.c.l.b16 %v188
    %v204 = vunpack.c.l.b16 %v189
    %v205 = vunpack.c.l.b16 %v190
    %v206 = vpack.c.b16 %v203, %v202
    %v207 = vpack.c.b16 %v205, %v204
    %vm210 = vcmask 261120
    %v212 = vsel %vm210, %v186, 0
    %214 = vmatprep.subr.bf16.mxu0 0
    %215 = vmatpush1.bf16.msra.mxu0 0
    %216 = vmatprep.subr.bf16.mxu0 0
    %217 = vmatpush1.bf16.msra.mxu0 0
    %218 = vmatprep.subr.bf16.mxu0 0
    %219 = vmatpush1.bf16.msra.mxu0 0
    %220 = vmatprep.subr.bf16.mxu0 0
    %221 = vmatpush1.bf16.msra.mxu0 0
    %222 = vmatprep.subr.bf16.mxu0 0
    %223 = vmatpush1.bf16.msra.mxu0 0
    %224 = vmatprep.subr.bf16.mxu0 0
    %225 = vmatpush1.bf16.msra.mxu0 0
    %226 = vmatprep.subr.bf16.mxu0 0
    %227 = vmatpush1.bf16.msra.mxu0 %v207
    %228 = vmatprep.subr.bf16.mxu0 0
    %229 = vmatpush1.bf16.msra.mxu0 %v206
    %230 = vmatprep.subr.bf16.mxu0 0
    %231 = vmatpush2.bf16.msra.mxu0 0
    %232 = vmatprep.subr.bf16.mxu0 0
    %233 = vmatpush2.bf16.msra.mxu0 0
    %234 = vmatprep.subr.bf16.mxu0 0
    %235 = vmatpush2.bf16.msra.mxu0 0
    %236 = vmatprep.subr.bf16.mxu0 0
    %237 = vmatpush2.bf16.msra.mxu0 0
    %238 = vmatprep.subr.bf16.mxu0 0
    %239 = vmatpush2.bf16.msra.mxu0 0
    %240 = vmatprep.subr.bf16.mxu0 0
    %241 = vmatpush2.bf16.msra.mxu0 0
    %242 = vmatprep.subr.bf16.mxu0 0
    %243 = vmatpush2.bf16.msra.mxu0 0
    %244 = vmatprep.subr.bf16.mxu0 0
    %245 = vmatpush2.bf16.msra.mxu0 0
    %246 = vmatprep.mubr.bf16.mxu0 0
    %247 = vmatmul.mubr.bf16.gmra.mxu0 %v212
    %v248 = vpop.f32.mrf.mxu0
    %v249 = vadd.f32 %v196, %v248
    %v250 = vpop.f32.mrf.mxu0
    %v251 = vpop.f32.mrf.mxu0
    %v252 = vadd.f32 %v196, %v251
    %v253 = vpop.f32.mrf.mxu0
    %254 = vdwg.mxu0
    %v255 = vmax.f32 %v249, 0.0
    %v256 = vmax.f32 %v252, 0.0
    %v257 = vpack.c.bf16 %v256, %v255
    %v258 = vld [vmem:[#allocation8] sm:$0xf]
    %v259 = vld [vmem:[#allocation8 + $0x4] sm:$0xf]
    %v260 = vld [vmem:[#allocation8 + $0x8] sm:$0xf]
    %v261 = vld [vmem:[#allocation8 + $0xc] sm:$0xf]
    %v262 = vld [vmem:[%s8] sm:$0x1]
    %v264 = vlaneseq
    %v265 = vshrl.u32 %v264, 7
    %v266 = vsub.s32 0, %v265
    %v267 = vrot.slane %v262, %v266
    %v273 = vunpack.c.l.b16 %v258
    %v274 = vunpack.c.l.b16 %v259
    %v275 = vunpack.c.l.b16 %v260
    %v276 = vunpack.c.l.b16 %v261
    %v277 = vpack.c.b16 %v274, %v273
    %v278 = vpack.c.b16 %v276, %v275
    %v282 = vsel %vm210, %v257, 0
    %284 = vmatprep.subr.bf16.mxu0 0
    %285 = vmatpush1.bf16.msra.mxu0 0
    %286 = vmatprep.subr.bf16.mxu0 0
    %287 = vmatpush1.bf16.msra.mxu0 0
    %288 = vmatprep.subr.bf16.mxu0 0
    %289 = vmatpush1.bf16.msra.mxu0 0
    %290 = vmatprep.subr.bf16.mxu0 0
    %291 = vmatpush1.bf16.msra.mxu0 0
    %292 = vmatprep.subr.bf16.mxu0 0
    %293 = vmatpush1.bf16.msra.mxu0 0
    %294 = vmatprep.subr.bf16.mxu0 0
    %295 = vmatpush1.bf16.msra.mxu0 0
    %296 = vmatprep.subr.bf16.mxu0 0
    %297 = vmatpush1.bf16.msra.mxu0 %v278
    %298 = vmatprep.subr.bf16.mxu0 0
    %299 = vmatpush1.bf16.msra.mxu0 %v277
    %300 = vmatprep.subr.bf16.mxu0 0
    %301 = vmatpush2.bf16.msra.mxu0 0
    %302 = vmatprep.subr.bf16.mxu0 0
    %303 = vmatpush2.bf16.msra.mxu0 0
    %304 = vmatprep.subr.bf16.mxu0 0
    %305 = vmatpush2.bf16.msra.mxu0 0
    %306 = vmatprep.subr.bf16.mxu0 0
    %307 = vmatpush2.bf16.msra.mxu0 0
    %308 = vmatprep.subr.bf16.mxu0 0
    %309 = vmatpush2.bf16.msra.mxu0 0
    %310 = vmatprep.subr.bf16.mxu0 0
    %311 = vmatpush2.bf16.msra.mxu0 0
    %312 = vmatprep.subr.bf16.mxu0 0
    %313 = vmatpush2.bf16.msra.mxu0 0
    %314 = vmatprep.subr.bf16.mxu0 0
    %315 = vmatpush2.bf16.msra.mxu0 0
    %316 = vmatprep.mubr.bf16.mxu0 0
    %317 = vmatmul.mubr.bf16.gmra.mxu0 %v282
    %v318 = vpop.f32.mrf.mxu0
    %v319 = vadd.f32 %v267, %v318
    %v320 = vpop.f32.mrf.mxu0
    %v321 = vpop.f32.mrf.mxu0
    %v322 = vadd.f32 %v267, %v321
    %v323 = vpop.f32.mrf.mxu0
    %324 = vdwg.mxu0
    %v325 = vld [vmem:[%s9] sm:$0x1]
    %v327 = vlaneseq
    %v328 = vshrl.u32 %v327, 7
    %v329 = vsub.s32 0, %v328
    %v330 = vrot.slane %v325, %v329
    %v332 = vmax.f32 %v319, %v330
    %v333 = vmax.f32 %v322, %v330
    %v334 = vld [vmem:[%s10] sm:$0x1]
    %v336 = vlaneseq
    %v337 = vshrl.u32 %v336, 7
    %v338 = vsub.s32 0, %v337
    %v339 = vrot.slane %v334, %v338
    %v341 = vmin.f32 %v332, %v339
    %v342 = vmin.f32 %v333, %v339
    %343 = vst [vmem:[#allocation10] sm:$0xff] %v341
    %344 = vst [vmem:[#allocation10 + $0x8] sm:$0xff] %v342
    // Predicated region
    $region62: #{tpu_custom_call.1} parent=1 // pred_check
      _
    $region63: #{tpu_custom_call.1} parent=1 // pred_check_branch
      %346 = sbr.rel (0) target = $region65
    $region64: #{tpu_custom_call.1} parent=1 // pred_region
      %s348 = ssub.s32 256, 256
      %349 = vsyncadd [#allocation4], %s348
      %s350 = sshll.u32 [#allocation10], 4
      %s351 = int_to_ptr.vmem [resolvable:$true] %s350
      %356 = dma.vmem_to_hbm [thread:$0]  %s351, 256, %s11, [#allocation4], 128, 128, 8
    $region65: #{tpu_custom_call.1} parent=1 // pred_fallthru
      _
    // Predicated region
    $region66: #{tpu_custom_call.1} parent=1 // pred_check
      _
    $region67: #{tpu_custom_call.1} parent=1 // pred_check_branch
      %358 = sbr.rel (0) target = $region69
    $region68: #{tpu_custom_call.1} parent=1 // pred_region
      %359 = dma.done [#allocation4], 256
    $region69: #{tpu_custom_call.1} parent=1 // pred_fallthru
      _
    %360 = vsyncpa [#allocation3], 1
    %361 = vsyncpa [#allocation6], 1
    %362 = vsyncpa [#allocation9], 1
    %363 = vsyncpa [#allocation4], 1

</llo_original>
